<compile_context>
chip_gen: v7x
topology: tpu7x:2x2x1
jax: 0.10.0
libtpu: 0.0.40
codegen_flags: <defaults>
</compile_context>

<pallas_src>
import functools

import jax
import jax.numpy as jnp
from jax.experimental import pallas as pl
from jax.experimental.pallas import tpu as pltpu

# Config for MountainCarContinuous-v0
STATE_DIMENSION = 2
ACTION_DIMENSION = 1
ACTION_BOUND = 1.0
HIDDEN_DIMS = [32, 64, 32]

# ---- packed parameter-slab layout (all f32, 128 lanes wide) -----------------
LANES = 128
CARRIER_ROW = 127              # hidden row kept at 1.0 to carry the biases
W1_OFF = 0                     # (128,128): cols 0..S-1 = W1^T cols, col S = b1 (+carrier)
W2_OFF = W1_OFF + LANES        # (128,128): W2^T with b2 in lane 127, carrier at (127,127)
W3_OFF = W2_OFF + LANES        # (128,128): W3^T with b3 in lane 127, carrier at (127,127)
W4_OFF = W3_OFF + LANES        # (  8,128): row a = W4[:,a] with b4[a] in lane 127
SLAB_ROWS = W4_OFF + 8         # 392 rows -> 392*128*4 B ~= 196 KiB in VMEM

TB_MAX = 2048                  # max batch tile (lanes); activations stay << VMEM


def _cdiv(a, b):
    return -(-a // b)


def _round_up(n, m):
    return ((n + m - 1) // m) * m


def pack_params(params):
    """Pack w1..w4 / b1..b4 once into one (392, 128) f32 slab (single DMA)."""
    f32 = jnp.float32
    w1 = jnp.asarray(params["w1"], f32)            # (S, 32)
    w2 = jnp.asarray(params["w2"], f32)            # (32, 64)
    w3 = jnp.asarray(params["w3"], f32)            # (64, 32)
    w4 = jnp.asarray(params["w4"], f32)            # (32, A)
    b1 = jnp.asarray(params["b1"], f32).reshape(-1)
    b2 = jnp.asarray(params["b2"], f32).reshape(-1)
    b3 = jnp.asarray(params["b3"], f32).reshape(-1)
    b4 = jnp.asarray(params["b4"], f32).reshape(-1)

    s_dim = w1.shape[0]
    a_dim = w4.shape[1]
    assert max(HIDDEN_DIMS) < CARRIER_ROW and s_dim + 1 <= LANES and a_dim <= 8

    # Layer 1 block: columns are W1^T columns (one per input feature) plus the
    # bias column (which also carries the constant 1.0 at CARRIER_ROW).
    blk1 = jnp.zeros((LANES, LANES), f32)
    blk1 = blk1.at[: w1.shape[1], :s_dim].set(w1.T)
    blk1 = blk1.at[: b1.shape[0], s_dim].set(b1)
    blk1 = blk1.at[CARRIER_ROW, s_dim].set(1.0)

    def aug_block(w, b):
        # rows = out features, lanes = in features; bias in lane CARRIER_ROW;
        # (CARRIER_ROW, CARRIER_ROW) = 1 keeps the carrier alive through ReLU.
        blk = jnp.zeros((LANES, LANES), f32)
        blk = blk.at[: w.shape[1], : w.shape[0]].set(w.T)
        blk = blk.at[: b.shape[0], CARRIER_ROW].set(b)
        blk = blk.at[CARRIER_ROW, CARRIER_ROW].set(1.0)
        return blk

    blk2 = aug_block(w2, b2)
    blk3 = aug_block(w3, b3)

    blk4 = jnp.zeros((8, LANES), f32)
    blk4 = blk4.at[:a_dim, : w4.shape[0]].set(w4.T)
    blk4 = blk4.at[:a_dim, CARRIER_ROW].set(b4)

    return jnp.concatenate([blk1, blk2, blk3, blk4], axis=0)   # (392, 128)


def actor_kernel(x_ref, slab_ref, *rest, action_bound, noise_scale, state_dim):
    """One batch tile of the MLP forward, fully lane-dense (batch on lanes).

    Activations are (128 feature-rows, tb batch-lanes).  Rows above the true
    hidden width are exactly 0 (zero-padded weights); row 127 is held at 1.0
    and carries the biases through every matmul.
    """
    if noise_scale is not None:
        noise_ref, o_ref = rest
    else:
        (o_ref,) = rest

    # ---- layer 1 (S -> 32) on the VPU: K = state_dim is tiny, skip the MXU --
    h = slab_ref[W1_OFF:W1_OFF + LANES, state_dim:state_dim + 1]       # bias col (128,1)
    for s in range(state_dim):                                         # static unroll
        h = h + slab_ref[W1_OFF:W1_OFF + LANES, s:s + 1] * x_ref[s:s + 1, :]
    h = jnp.maximum(h, 0.0)                                            # (128, tb)

    # ---- layer 2 (32 -> 64) and layer 3 (64 -> 32) on the MXU ---------------
    h = jnp.maximum(jnp.dot(slab_ref[W2_OFF:W2_OFF + LANES, :], h,
                            preferred_element_type=jnp.float32), 0.0)
    h = jnp.maximum(jnp.dot(slab_ref[W3_OFF:W3_OFF + LANES, :], h,
                            preferred_element_type=jnp.float32), 0.0)

    # ---- layer 4 (32 -> A) as an (8,128)@(128,tb) MXU dot --------------------
    # Rows >= action_dim of `a` are junk (never read back in the wrapper).
    a = jnp.dot(slab_ref[W4_OFF:W4_OFF + 8, :], h,
                preferred_element_type=jnp.float32)                    # (8, tb)
    a = jnp.tanh(a) * action_bound

    # ---- fused exploration noise + clip (noise drawn host-side, torch.randn) -
    if noise_scale is not None:
        a = jnp.clip(a + noise_ref[...] * noise_scale, -action_bound, action_bound)

    o_ref[...] = a.astype(o_ref.dtype)


@functools.partial(jax.jit, static_argnames=("action_bound", "noise_scale", "tb_max"))
def actor_forward(x, slab, noise_key=None, *, action_bound=ACTION_BOUND,
                  noise_scale=None, tb_max=TB_MAX):
    """Pallas-backed Actor.forward.  `slab` = pack_params(params), packed once."""
    batch, state_dim = x.shape

    # Batch tiling: minimize padding + grid steps; tb is a multiple of 128 so
    # every block keeps the batch lane-dense.
    steps = max(1, _cdiv(batch, tb_max))
    tb = _round_up(_cdiv(batch, steps), LANES)
    batch_pad = steps * tb

    # Transposed, zero-padded input: (state_dim, batch_pad), batch on lanes.
    xT = jnp.zeros((state_dim, batch_pad), jnp.float32)
    xT = xT.at[:, :batch].set(x.astype(jnp.float32).T)

    args = [xT, slab]
    in_specs = [
        pl.BlockSpec((state_dim, tb), lambda i: (0, i)),
        # constant index_map -> parameter slab stays VMEM-resident across steps
        pl.BlockSpec((SLAB_ROWS, LANES), lambda i: (0, 0)),
    ]
    if noise_scale is not None:
        noise = jax.random.normal(noise_key, (8, batch_pad), jnp.float32)
        args.append(noise)
        in_specs.append(pl.BlockSpec((8, tb), lambda i: (0, i)))

    kernel = functools.partial(
        actor_kernel,
        action_bound=float(action_bound),
        noise_scale=None if noise_scale is None else float(noise_scale),
        state_dim=state_dim)

    out = pl.pallas_call(
        kernel,
        out_shape=jax.ShapeDtypeStruct((8, batch_pad), jnp.float32),
        grid_spec=pltpu.PrefetchScalarGridSpec(
            num_scalar_prefetch=0,
            grid=(steps,),
            in_specs=in_specs,
            out_specs=pl.BlockSpec((8, tb), lambda i: (0, i)),
        ),
        compiler_params=pltpu.CompilerParams(
            dimension_semantics=("parallel",)),
    )(*args)

    # Rows 0..action_dim-1 hold the result; drop padded batch columns.
    return out[:ACTION_DIMENSION, :batch].T                            # (batch, A)


def init_params(key):
    """Deterministic init matching nn.Linear shapes (stored transposed: (in, out))."""
    dims = [STATE_DIMENSION] + HIDDEN_DIMS + [ACTION_DIMENSION]
    params = {}
    for i in range(len(dims) - 1):
        key, kw, kb = jax.random.split(key, 3)
        fan_in = dims[i]
        bound = 1.0 / jnp.sqrt(fan_in)
        params[f"w{i + 1}"] = jax.random.uniform(
            kw, (dims[i], dims[i + 1]), jnp.float32, -bound, bound)
        params[f"b{i + 1}"] = jax.random.uniform(
            kb, (1, dims[i + 1]), jnp.float32, -bound, bound)
    return params


def actor_reference(x, params, action_bound=ACTION_BOUND):
    hp = jax.lax.Precision.HIGHEST
    h = x
    h = jnp.maximum(jnp.dot(h, params["w1"], precision=hp) + params["b1"], 0.0)
    h = jnp.maximum(jnp.dot(h, params["w2"], precision=hp) + params["b2"], 0.0)
    h = jnp.maximum(jnp.dot(h, params["w3"], precision=hp) + params["b3"], 0.0)
    return jnp.tanh(jnp.dot(h, params["w4"], precision=hp) + params["b4"]) * action_bound


if __name__ == "__main__":
    key = jax.random.PRNGKey(0)
    key, pkey, xkey, xkey2, nkey = jax.random.split(key, 5)

    params = init_params(pkey)
    slab = pack_params(params)          # packed ONCE, reused by every forward

    # Small batch (single grid step).
    batch = 8
    x = jax.random.normal(xkey, (batch, STATE_DIMENSION), jnp.float32)
    a = jax.block_until_ready(actor_forward(x, slab))
    a_ref = actor_reference(x, params)
    assert a.shape == (batch, ACTION_DIMENSION)
    assert jnp.allclose(a, a_ref, atol=1e-4, rtol=1e-4), (a, a_ref)

    # Larger batch, small tile cap -> exercises a 3-step batch grid + padding.
    batch2 = 300
    x2 = jax.random.normal(xkey2, (batch2, STATE_DIMENSION), jnp.float32)
    a2 = jax.block_until_ready(actor_forward(x2, slab, tb_max=128))
    a2_ref = actor_reference(x2, params)
    assert a2.shape == (batch2, ACTION_DIMENSION)
    assert jnp.allclose(a2, a2_ref, atol=1e-4, rtol=1e-4)

    # Same batch with the default (batch-derived) tile: single grid step.
    a2b = jax.block_until_ready(actor_forward(x2, slab))
    assert jnp.allclose(a2b, a2_ref, atol=1e-4, rtol=1e-4)

    # Exploration-noise + clip path (noise drawn with jax.random.normal,
    # add + clip fused into the kernel epilogue).
    a_noisy = jax.block_until_ready(
        actor_forward(x, slab, noise_key=nkey, noise_scale=0.1))
    assert a_noisy.shape == (batch, ACTION_DIMENSION)
    assert bool(jnp.all(jnp.abs(a_noisy) <= ACTION_BOUND + 1e-6))

    # TODO(synk): run_model / gym environment rollout loop is host-side control
    # flow and is not translated to Pallas.
    print("KERNEL_OK")
</pallas_src>

<mosaic_0001>
module attributes {stable_mosaic.version = 11 : i64} {
  func.func @actor_kernel(%arg0: i32, %arg1: memref<2x128xf32, #tpu.memory_space<vmem>>, %arg2: memref<392x128xf32, #tpu.memory_space<vmem>>, %arg3: memref<8x128xf32, #tpu.memory_space<vmem>>) attributes {dimension_semantics = [#tpu.dimension_semantics<parallel>], iteration_bounds = array<i64: 1>, scalar_prefetch = 0 : i64, scratch_operands = 0 : i64, tpu.core_type = #tpu.core_type<tc>, window_params = [{transform_indices = @transform_0, window_bounds = array<i64: 2, 128>}, {pipeline_mode = #tpu.pipeline_mode<synchronous>, transform_indices = @transform_1, window_bounds = array<i64: 392, 128>}, {transform_indices = @transform_2, window_bounds = array<i64: 8, 128>}]} {
    %c0 = arith.constant 0 : index
    %c2 = arith.constant 2 : index
    %0 = vector.load %arg2[%c0, %c2] : memref<392x128xf32, #tpu.memory_space<vmem>>, vector<128x1xf32>
    %c0_0 = arith.constant 0 : index
    %c0_1 = arith.constant 0 : index
    %1 = vector.load %arg2[%c0_0, %c0_1] : memref<392x128xf32, #tpu.memory_space<vmem>>, vector<128x1xf32>
    %c0_2 = arith.constant 0 : index
    %c0_3 = arith.constant 0 : index
    %2 = vector.load %arg1[%c0_2, %c0_3] : memref<2x128xf32, #tpu.memory_space<vmem>>, vector<1x128xf32>
    %3 = vector.broadcast %1 : vector<128x1xf32> to vector<128x128xf32>
    %4 = vector.broadcast %2 : vector<1x128xf32> to vector<128x128xf32>
    %5 = arith.mulf %3, %4 : vector<128x128xf32>
    %6 = vector.broadcast %0 : vector<128x1xf32> to vector<128x128xf32>
    %7 = arith.addf %6, %5 : vector<128x128xf32>
    %c0_4 = arith.constant 0 : index
    %c1 = arith.constant 1 : index
    %8 = vector.load %arg2[%c0_4, %c1] : memref<392x128xf32, #tpu.memory_space<vmem>>, vector<128x1xf32>
    %c1_5 = arith.constant 1 : index
    %c0_6 = arith.constant 0 : index
    %9 = vector.load %arg1[%c1_5, %c0_6] : memref<2x128xf32, #tpu.memory_space<vmem>>, vector<1x128xf32>
    %10 = vector.broadcast %8 : vector<128x1xf32> to vector<128x128xf32>
    %11 = vector.broadcast %9 : vector<1x128xf32> to vector<128x128xf32>
    %12 = arith.mulf %10, %11 : vector<128x128xf32>
    %13 = arith.addf %7, %12 : vector<128x128xf32>
    %cst = arith.constant 0.000000e+00 : f32
    %14 = vector.broadcast %cst : f32 to vector<128x128xf32>
    %15 = arith.maximumf %13, %14 : vector<128x128xf32>
    %c128 = arith.constant 128 : index
    %c0_7 = arith.constant 0 : index
    %16 = vector.load %arg2[%c128, %c0_7] : memref<392x128xf32, #tpu.memory_space<vmem>>, vector<128x128xf32>
    %cst_8 = arith.constant dense<0.000000e+00> : vector<128x128xf32>
    %17 = tpu.matmul %16, %15, %cst_8 {dimension_numbers = #tpu.dot_dimension_numbers<[1], [0], [0], [1], [0, 0, 1, 1], [], []>} : vector<128x128xf32>, vector<128x128xf32>, vector<128x128xf32> -> vector<128x128xf32>
    %cst_9 = arith.constant 0.000000e+00 : f32
    %18 = vector.broadcast %cst_9 : f32 to vector<128x128xf32>
    %19 = arith.maximumf %17, %18 : vector<128x128xf32>
    %c256 = arith.constant 256 : index
    %c0_10 = arith.constant 0 : index
    %20 = vector.load %arg2[%c256, %c0_10] : memref<392x128xf32, #tpu.memory_space<vmem>>, vector<128x128xf32>
    %cst_11 = arith.constant dense<0.000000e+00> : vector<128x128xf32>
    %21 = tpu.matmul %20, %19, %cst_11 {dimension_numbers = #tpu.dot_dimension_numbers<[1], [0], [0], [1], [0, 0, 1, 1], [], []>} : vector<128x128xf32>, vector<128x128xf32>, vector<128x128xf32> -> vector<128x128xf32>
    %cst_12 = arith.constant 0.000000e+00 : f32
    %22 = vector.broadcast %cst_12 : f32 to vector<128x128xf32>
    %23 = arith.maximumf %21, %22 : vector<128x128xf32>
    %c384 = arith.constant 384 : index
    %c0_13 = arith.constant 0 : index
    %24 = vector.load %arg2[%c384, %c0_13] : memref<392x128xf32, #tpu.memory_space<vmem>>, vector<8x128xf32>
    %cst_14 = arith.constant dense<0.000000e+00> : vector<8x128xf32>
    %25 = tpu.matmul %24, %23, %cst_14 {dimension_numbers = #tpu.dot_dimension_numbers<[1], [0], [0], [1], [0, 0, 1, 1], [], []>} : vector<8x128xf32>, vector<128x128xf32>, vector<8x128xf32> -> vector<8x128xf32>
    %26 = math.tanh %25 : vector<8x128xf32>
    %cst_15 = arith.constant 1.000000e+00 : f32
    %27 = vector.broadcast %cst_15 : f32 to vector<8x128xf32>
    %28 = arith.mulf %26, %27 : vector<8x128xf32>
    %c0_16 = arith.constant 0 : index
    %c0_17 = arith.constant 0 : index
    %29 = vector.load %arg3[%c0_16, %c0_17] : memref<8x128xf32, #tpu.memory_space<vmem>>, vector<8x128xf32>
    tpu.vector_store %arg3[%c0_16, %c0_17], %28 {strides = array<i32>} : memref<8x128xf32, #tpu.memory_space<vmem>>, vector<8x128xf32>,
    return
  }
  func.func @transform_0(%arg0: i32) -> (i32, i32) {
    %c0_i32 = arith.constant 0 : i32
    %c0_i32_0 = arith.constant 0 : i32
    return %c0_i32, %arg0 : i32, i32
  }
  func.func @transform_1(%arg0: i32) -> (i32, i32) {
    %c0_i32 = arith.constant 0 : i32
    %c0_i32_0 = arith.constant 0 : i32
    %c0_i32_1 = arith.constant 0 : i32
    return %c0_i32, %c0_i32_0 : i32, i32
  }
  func.func @transform_2(%arg0: i32) -> (i32, i32) {
    %c0_i32 = arith.constant 0 : i32
    %c0_i32_0 = arith.constant 0 : i32
    return %c0_i32, %arg0 : i32, i32
  }
}

</mosaic_0001>

<llo_original>
// kernel: actor_forward.1
$region0: #{actor_forward.1}
  #allocation0 [shape = 'u32[]', space=smem, size = 0x4, offset = 0x4, fixed_abs, tag = 'smem constant byte address 0x4 - core index']
  #allocation1 [shape = 'u32[144,128]{1,0:T(1,128)}', space=vmem, size = 0x12000, scoped, tag = 'internal scratch']
  %s0 = inlined_call_operand.vmem [shape: f32[2,128], index: 0, kind: input, shape index: {}]
  %s1 = inlined_call_operand.hbm [shape: f32[392,128], index: 1, kind: input, shape index: {}]
  %s2 = inlined_call_operand.vmem [shape: f32[8,128], index: 2, kind: output, shape index: {}]
  %s3 = sld [smem:[#allocation0]]
  $region22: #{actor_forward.1} parent=0
    _
  %s5 = ssub.s32 1, %s3
  %s6 = scalar_select 0, %s5, %s3
  $region1: #{actor_forward.1} parent=0
    #allocation2 [shape = 'u8[200704]{0}', space=vmem, size = 0x31000, scoped, tag = 'input window, operand 1, single buffered']
    #allocation3 [shape = 's32[1]{0}', space=sflag, size = 0x4, scoped, tag = 'scoped memory for actor_forward.1']
    %7 = vsyncpa [#allocation3], 0
    // Predicated region
    $region2: #{actor_forward.1} parent=1 // pred_check
      _
    $region3: #{actor_forward.1} parent=1 // pred_check_branch
      %9 = sbr.rel (0) target = $region5
    $region4: #{actor_forward.1} parent=1 // pred_region
      _
    $region5: #{actor_forward.1} parent=1 // pred_fallthru
      _
    // Predicated region
    $region6: #{actor_forward.1} parent=1 // pred_check
      _
    $region7: #{actor_forward.1} parent=1 // pred_check_branch
      %11 = sbr.rel (0) target = $region9
    $region8: #{actor_forward.1} parent=1 // pred_region
      %s13 = ssub.s32 6272, 6272
      %14 = vsyncadd [#allocation3], %s13
      %s15 = sshll.u32 [#allocation2], 4
      %s16 = int_to_ptr.vmem [resolvable:$true] %s15
      %21 = dma.hbm_to_vmem [thread:$0]  %s1, 6272, %s16, [#allocation3], 128, 128, 8
    $region9: #{actor_forward.1} parent=1 // pred_fallthru
      _
    // Predicated region
    $region10: #{actor_forward.1} parent=1 // pred_check
      _
    $region11: #{actor_forward.1} parent=1 // pred_check_branch
      %23 = sbr.rel (0) target = $region13
    $region12: #{actor_forward.1} parent=1 // pred_region
      %24 = dma.done [#allocation3], 6272
    $region13: #{actor_forward.1} parent=1 // pred_fallthru
      _
    %v25 = vld [vmem:[#allocation2] sm:$0xff]
    %v26 = vld [vmem:[#allocation2 + $0x8] sm:$0xff]
    %v27 = vld [vmem:[#allocation2 + $0x10] sm:$0xff]
    %v28 = vld [vmem:[#allocation2 + $0x18] sm:$0xff]
    %v29 = vld [vmem:[#allocation2 + $0x20] sm:$0xff]
    %v30 = vld [vmem:[#allocation2 + $0x28] sm:$0xff]
    %v31 = vld [vmem:[#allocation2 + $0x30] sm:$0xff]
    %v32 = vld [vmem:[#allocation2 + $0x38] sm:$0xff]
    %v33 = vld [vmem:[#allocation2 + $0x40] sm:$0xff]
    %v34 = vld [vmem:[#allocation2 + $0x48] sm:$0xff]
    %v35 = vld [vmem:[#allocation2 + $0x50] sm:$0xff]
    %v36 = vld [vmem:[#allocation2 + $0x58] sm:$0xff]
    %v37 = vld [vmem:[#allocation2 + $0x60] sm:$0xff]
    %v38 = vld [vmem:[#allocation2 + $0x68] sm:$0xff]
    %v39 = vld [vmem:[#allocation2 + $0x70] sm:$0xff]
    %v40 = vld [vmem:[#allocation2 + $0x78] sm:$0xff]
    %v41 = vld [vmem:[%s0] sm:$0x1]
    %43 = vset.pattern.permute.xlu0 0
    %44 = vperm.xlu0 %43, %v25
    %v45 = vpop.permute.xlu0 %44
    %48 = vset.pattern.permute.xlu0 0
    %49 = vperm.xlu0 %48, %v26
    %v50 = vpop.permute.xlu0 %49
    %53 = vset.pattern.permute.xlu0 0
    %54 = vperm.xlu0 %53, %v27
    %v55 = vpop.permute.xlu0 %54
    %58 = vset.pattern.permute.xlu0 0
    %59 = vperm.xlu0 %58, %v28
    %v60 = vpop.permute.xlu0 %59
    %63 = vset.pattern.permute.xlu0 0
    %64 = vperm.xlu0 %63, %v29
    %v65 = vpop.permute.xlu0 %64
    %68 = vset.pattern.permute.xlu0 0
    %69 = vperm.xlu0 %68, %v30
    %v70 = vpop.permute.xlu0 %69
    %73 = vset.pattern.permute.xlu0 0
    %74 = vperm.xlu0 %73, %v31
    %v75 = vpop.permute.xlu0 %74
    %78 = vset.pattern.permute.xlu0 0
    %79 = vperm.xlu0 %78, %v32
    %v80 = vpop.permute.xlu0 %79
    %83 = vset.pattern.permute.xlu0 0
    %84 = vperm.xlu0 %83, %v33
    %v85 = vpop.permute.xlu0 %84
    %88 = vset.pattern.permute.xlu0 0
    %89 = vperm.xlu0 %88, %v34
    %v90 = vpop.permute.xlu0 %89
    %93 = vset.pattern.permute.xlu0 0
    %94 = vperm.xlu0 %93, %v35
    %v95 = vpop.permute.xlu0 %94
    %98 = vset.pattern.permute.xlu0 0
    %99 = vperm.xlu0 %98, %v36
    %v100 = vpop.permute.xlu0 %99
    %103 = vset.pattern.permute.xlu0 0
    %104 = vperm.xlu0 %103, %v37
    %v105 = vpop.permute.xlu0 %104
    %108 = vset.pattern.permute.xlu0 0
    %109 = vperm.xlu0 %108, %v38
    %v110 = vpop.permute.xlu0 %109
    %113 = vset.pattern.permute.xlu0 0
    %114 = vperm.xlu0 %113, %v39
    %v115 = vpop.permute.xlu0 %114
    %118 = vset.pattern.permute.xlu0 0
    %119 = vperm.xlu0 %118, %v40
    %v120 = vpop.permute.xlu0 %119
    %v122 = vlaneseq
    %v123 = vshrl.u32 %v122, 7
    %v124 = vsub.s32 0, %v123
    %v125 = vrot.slane %v41, %v124
    %v126 = vmul.f32 %v45, %v125
    %v127 = vmul.f32 %v50, %v125
    %v128 = vmul.f32 %v55, %v125
    %v129 = vmul.f32 %v60, %v125
    %v130 = vmul.f32 %v65, %v125
    %v131 = vmul.f32 %v70, %v125
    %v132 = vmul.f32 %v75, %v125
    %v133 = vmul.f32 %v80, %v125
    %v134 = vmul.f32 %v85, %v125
    %v135 = vmul.f32 %v90, %v125
    %v136 = vmul.f32 %v95, %v125
    %v137 = vmul.f32 %v100, %v125
    %v138 = vmul.f32 %v105, %v125
    %v139 = vmul.f32 %v110, %v125
    %v140 = vmul.f32 %v115, %v125
    %v141 = vmul.f32 %v120, %v125
    %142 = vset.pattern.permute.xlu0 2
    %143 = vperm.xlu0 %142, %v25
    %v144 = vpop.permute.xlu0 %143
    %146 = vset.pattern.permute.xlu0 2
    %147 = vperm.xlu0 %146, %v26
    %v148 = vpop.permute.xlu0 %147
    %150 = vset.pattern.permute.xlu0 2
    %151 = vperm.xlu0 %150, %v27
    %v152 = vpop.permute.xlu0 %151
    %154 = vset.pattern.permute.xlu0 2
    %155 = vperm.xlu0 %154, %v28
    %v156 = vpop.permute.xlu0 %155
    %158 = vset.pattern.permute.xlu0 2
    %159 = vperm.xlu0 %158, %v29
    %v160 = vpop.permute.xlu0 %159
    %162 = vset.pattern.permute.xlu0 2
    %163 = vperm.xlu0 %162, %v30
    %v164 = vpop.permute.xlu0 %163
    %166 = vset.pattern.permute.xlu0 2
    %167 = vperm.xlu0 %166, %v31
    %v168 = vpop.permute.xlu0 %167
    %170 = vset.pattern.permute.xlu0 2
    %171 = vperm.xlu0 %170, %v32
    %v172 = vpop.permute.xlu0 %171
    %174 = vset.pattern.permute.xlu0 2
    %175 = vperm.xlu0 %174, %v33
    %v176 = vpop.permute.xlu0 %175
    %178 = vset.pattern.permute.xlu0 2
    %179 = vperm.xlu0 %178, %v34
    %v180 = vpop.permute.xlu0 %179
    %182 = vset.pattern.permute.xlu0 2
    %183 = vperm.xlu0 %182, %v35
    %v184 = vpop.permute.xlu0 %183
    %186 = vset.pattern.permute.xlu0 2
    %187 = vperm.xlu0 %186, %v36
    %v188 = vpop.permute.xlu0 %187
    %190 = vset.pattern.permute.xlu0 2
    %191 = vperm.xlu0 %190, %v37
    %v192 = vpop.permute.xlu0 %191
    %194 = vset.pattern.permute.xlu0 2
    %195 = vperm.xlu0 %194, %v38
    %v196 = vpop.permute.xlu0 %195
    %198 = vset.pattern.permute.xlu0 2
    %199 = vperm.xlu0 %198, %v39
    %v200 = vpop.permute.xlu0 %199
    %202 = vset.pattern.permute.xlu0 2
    %203 = vperm.xlu0 %202, %v40
    %v204 = vpop.permute.xlu0 %203
    %v206 = vadd.f32 %v144, %v126
    %v207 = vadd.f32 %v148, %v127
    %v208 = vadd.f32 %v152, %v128
    %v209 = vadd.f32 %v156, %v129
    %v210 = vadd.f32 %v160, %v130
    %v211 = vadd.f32 %v164, %v131
    %v212 = vadd.f32 %v168, %v132
    %v213 = vadd.f32 %v172, %v133
    %v214 = vadd.f32 %v176, %v134
    %v215 = vadd.f32 %v180, %v135
    %v216 = vadd.f32 %v184, %v136
    %v217 = vadd.f32 %v188, %v137
    %v218 = vadd.f32 %v192, %v138
    %v219 = vadd.f32 %v196, %v139
    %v220 = vadd.f32 %v200, %v140
    %v221 = vadd.f32 %v204, %v141
    %v222 = vld [vmem:[%s0 + $0x1] sm:$0x1]
    %223 = vset.pattern.permute.xlu0 1
    %224 = vperm.xlu0 %223, %v25
    %v225 = vpop.permute.xlu0 %224
    %227 = vset.pattern.permute.xlu0 1
    %228 = vperm.xlu0 %227, %v26
    %v229 = vpop.permute.xlu0 %228
    %231 = vset.pattern.permute.xlu0 1
    %232 = vperm.xlu0 %231, %v27
    %v233 = vpop.permute.xlu0 %232
    %235 = vset.pattern.permute.xlu0 1
    %236 = vperm.xlu0 %235, %v28
    %v237 = vpop.permute.xlu0 %236
    %239 = vset.pattern.permute.xlu0 1
    %240 = vperm.xlu0 %239, %v29
    %v241 = vpop.permute.xlu0 %240
    %243 = vset.pattern.permute.xlu0 1
    %244 = vperm.xlu0 %243, %v30
    %v245 = vpop.permute.xlu0 %244
    %247 = vset.pattern.permute.xlu0 1
    %248 = vperm.xlu0 %247, %v31
    %v249 = vpop.permute.xlu0 %248
    %251 = vset.pattern.permute.xlu0 1
    %252 = vperm.xlu0 %251, %v32
    %v253 = vpop.permute.xlu0 %252
    %255 = vset.pattern.permute.xlu0 1
    %256 = vperm.xlu0 %255, %v33
    %v257 = vpop.permute.xlu0 %256
    %259 = vset.pattern.permute.xlu0 1
    %260 = vperm.xlu0 %259, %v34
    %v261 = vpop.permute.xlu0 %260
    %263 = vset.pattern.permute.xlu0 1
    %264 = vperm.xlu0 %263, %v35
    %v265 = vpop.permute.xlu0 %264
    %267 = vset.pattern.permute.xlu0 1
    %268 = vperm.xlu0 %267, %v36
    %v269 = vpop.permute.xlu0 %268
    %271 = vset.pattern.permute.xlu0 1
    %272 = vperm.xlu0 %271, %v37
    %v273 = vpop.permute.xlu0 %272
    %275 = vset.pattern.permute.xlu0 1
    %276 = vperm.xlu0 %275, %v38
    %v277 = vpop.permute.xlu0 %276
    %279 = vset.pattern.permute.xlu0 1
    %280 = vperm.xlu0 %279, %v39
    %v281 = vpop.permute.xlu0 %280
    %283 = vset.pattern.permute.xlu0 1
    %284 = vperm.xlu0 %283, %v40
    %v285 = vpop.permute.xlu0 %284
    %v287 = vlaneseq
    %v288 = vshrl.u32 %v287, 7
    %v289 = vsub.s32 0, %v288
    %v290 = vrot.slane %v222, %v289
    %v291 = vmul.f32 %v225, %v290
    %v292 = vmul.f32 %v229, %v290
    %v293 = vmul.f32 %v233, %v290
    %v294 = vmul.f32 %v237, %v290
    %v295 = vmul.f32 %v241, %v290
    %v296 = vmul.f32 %v245, %v290
    %v297 = vmul.f32 %v249, %v290
    %v298 = vmul.f32 %v253, %v290
    %v299 = vmul.f32 %v257, %v290
    %v300 = vmul.f32 %v261, %v290
    %v301 = vmul.f32 %v265, %v290
    %v302 = vmul.f32 %v269, %v290
    %v303 = vmul.f32 %v273, %v290
    %v304 = vmul.f32 %v277, %v290
    %v305 = vmul.f32 %v281, %v290
    %v306 = vmul.f32 %v285, %v290
    %v307 = vadd.f32 %v206, %v291
    %v308 = vadd.f32 %v207, %v292
    %v309 = vadd.f32 %v208, %v293
    %v310 = vadd.f32 %v209, %v294
    %v311 = vadd.f32 %v210, %v295
    %v312 = vadd.f32 %v211, %v296
    %v313 = vadd.f32 %v212, %v297
    %v314 = vadd.f32 %v213, %v298
    %v315 = vadd.f32 %v214, %v299
    %v316 = vadd.f32 %v215, %v300
    %v317 = vadd.f32 %v216, %v301
    %v318 = vadd.f32 %v217, %v302
    %v319 = vadd.f32 %v218, %v303
    %v320 = vadd.f32 %v219, %v304
    %v321 = vadd.f32 %v220, %v305
    %v322 = vadd.f32 %v221, %v306
    %v323 = vmax.f32 %v307, 0.0
    %v324 = vmax.f32 %v308, 0.0
    %v325 = vmax.f32 %v309, 0.0
    %v326 = vmax.f32 %v310, 0.0
    %v327 = vmax.f32 %v311, 0.0
    %v328 = vmax.f32 %v312, 0.0
    %v329 = vmax.f32 %v313, 0.0
    %v330 = vmax.f32 %v314, 0.0
    %v331 = vmax.f32 %v315, 0.0
    %v332 = vmax.f32 %v316, 0.0
    %v333 = vmax.f32 %v317, 0.0
    %v334 = vmax.f32 %v318, 0.0
    %v335 = vmax.f32 %v319, 0.0
    %v336 = vmax.f32 %v320, 0.0
    %v337 = vmax.f32 %v321, 0.0
    %v338 = vmax.f32 %v322, 0.0
    %v339 = vld [vmem:[#allocation2 + $0x80] sm:$0xff]
    %v340 = vld [vmem:[#allocation2 + $0x88] sm:$0xff]
    %v341 = vld [vmem:[#allocation2 + $0x90] sm:$0xff]
    %v342 = vld [vmem:[#allocation2 + $0x98] sm:$0xff]
    %v343 = vld [vmem:[#allocation2 + $0xa0] sm:$0xff]
    %v344 = vld [vmem:[#allocation2 + $0xa8] sm:$0xff]
    %v345 = vld [vmem:[#allocation2 + $0xb0] sm:$0xff]
    %v346 = vld [vmem:[#allocation2 + $0xb8] sm:$0xff]
    %v347 = vld [vmem:[#allocation2 + $0xc0] sm:$0xff]
    %v348 = vld [vmem:[#allocation2 + $0xc8] sm:$0xff]
    %v349 = vld [vmem:[#allocation2 + $0xd0] sm:$0xff]
    %v350 = vld [vmem:[#allocation2 + $0xd8] sm:$0xff]
    %v351 = vld [vmem:[#allocation2 + $0xe0] sm:$0xff]
    %v352 = vld [vmem:[#allocation2 + $0xe8] sm:$0xff]
    %v353 = vld [vmem:[#allocation2 + $0xf0] sm:$0xff]
    %v354 = vld [vmem:[#allocation2 + $0xf8] sm:$0xff]
    %355 = vmatprep.subr.mxu0 0.0
    %356 = vmatpush1.msra.mxu0 %v323
    %357 = vmatprep.subr.mxu0 0.0
    %358 = vmatpush1.msra.mxu0 %v324
    %359 = vmatprep.subr.mxu0 0.0
    %360 = vmatpush1.msra.mxu0 %v325
    %361 = vmatprep.subr.mxu0 0.0
    %362 = vmatpush1.msra.mxu0 %v326
    %363 = vmatprep.subr.mxu0 0.0
    %364 = vmatpush1.msra.mxu0 %v327
    %365 = vmatprep.subr.mxu0 0.0
    %366 = vmatpush1.msra.mxu0 %v328
    %367 = vmatprep.subr.mxu0 0.0
    %368 = vmatpush1.msra.mxu0 %v329
    %369 = vmatprep.subr.mxu0 0.0
    %370 = vmatpush1.msra.mxu0 %v330
    %371 = vmatprep.subr.mxu0 0.0
    %372 = vmatpush1.msra.mxu0 %v331
    %373 = vmatprep.subr.mxu0 0.0
    %374 = vmatpush1.msra.mxu0 %v332
    %375 = vmatprep.subr.mxu0 0.0
    %376 = vmatpush1.msra.mxu0 %v333
    %377 = vmatprep.subr.mxu0 0.0
    %378 = vmatpush1.msra.mxu0 %v334
    %379 = vmatprep.subr.mxu0 0.0
    %380 = vmatpush1.msra.mxu0 %v335
    %381 = vmatprep.subr.mxu0 0.0
    %382 = vmatpush1.msra.mxu0 %v336
    %383 = vmatprep.subr.mxu0 0.0
    %384 = vmatpush1.msra.mxu0 %v337
    %385 = vmatprep.subr.mxu0 0.0
    %386 = vmatpush1.msra.mxu0 %v338
    %387 = vmatprep.subr.mxu0 0.0
    %388 = vmatpush1.msra.mxu0 0.0
    %389 = vmatprep.subr.mxu0 0.0
    %390 = vmatpush1.msra.mxu0 0.0
    %391 = vmatprep.subr.mxu0 0.0
    %392 = vmatpush1.msra.mxu0 0.0
    %393 = vmatprep.subr.mxu0 0.0
    %394 = vmatpush1.msra.mxu0 0.0
    %395 = vmatprep.subr.mxu0 0.0
    %396 = vmatpush1.msra.mxu0 0.0
    %397 = vmatprep.subr.mxu0 0.0
    %398 = vmatpush1.msra.mxu0 0.0
    %399 = vmatprep.subr.mxu0 0.0
    %400 = vmatpush1.msra.mxu0 0.0
    %401 = vmatprep.subr.mxu0 0.0
    %402 = vmatpush1.msra.mxu0 0.0
    %403 = vmatprep.subr.mxu0 0.0
    %404 = vmatpush1.msra.mxu0 0.0
    %405 = vmatprep.subr.mxu0 0.0
    %406 = vmatpush1.msra.mxu0 0.0
    %407 = vmatprep.subr.mxu0 0.0
    %408 = vmatpush1.msra.mxu0 0.0
    %409 = vmatprep.subr.mxu0 0.0
    %410 = vmatpush1.msra.mxu0 0.0
    %411 = vmatprep.subr.mxu0 0.0
    %412 = vmatpush1.msra.mxu0 0.0
    %413 = vmatprep.subr.mxu0 0.0
    %414 = vmatpush1.msra.mxu0 0.0
    %415 = vmatprep.subr.mxu0 0.0
    %416 = vmatpush1.msra.mxu0 0.0
    %417 = vmatprep.subr.mxu0 0.0
    %418 = vmatpush1.msra.mxu0 0.0
    %419 = vmatprep.mubr.f32.mxu0 0.0
    %420 = vmatmul.mubr.f32.gmra.mrb[0].mxu0 %v339
    %v421 = vpop.f32.mrb[0].mxu0
    %v422 = vadd.f32 0.0, %v421
    %v423 = vpop.f32.mrb[0].mxu0
    %424 = vmatprep.mubr.f32.mxu0 0.0
    %425 = vmatmul.mubr.f32.gmra.mrb[0].mxu0 %v340
    %v426 = vpop.f32.mrb[0].mxu0
    %v427 = vadd.f32 0.0, %v426
    %v428 = vpop.f32.mrb[0].mxu0
    %429 = vmatprep.mubr.f32.mxu0 0.0
    %430 = vmatmul.mubr.f32.gmra.mrb[0].mxu0 %v341
    %v431 = vpop.f32.mrb[0].mxu0
    %v432 = vadd.f32 0.0, %v431
    %v433 = vpop.f32.mrb[0].mxu0
    %434 = vmatprep.mubr.f32.mxu0 0.0
    %435 = vmatmul.mubr.f32.gmra.mrb[0].mxu0 %v342
    %v436 = vpop.f32.mrb[0].mxu0
    %v437 = vadd.f32 0.0, %v436
    %v438 = vpop.f32.mrb[0].mxu0
    %439 = vmatprep.mubr.f32.mxu0 0.0
    %440 = vmatmul.mubr.f32.gmra.mrb[0].mxu0 %v343
    %v441 = vpop.f32.mrb[0].mxu0
    %v442 = vadd.f32 0.0, %v441
    %v443 = vpop.f32.mrb[0].mxu0
    %444 = vmatprep.mubr.f32.mxu0 0.0
    %445 = vmatmul.mubr.f32.gmra.mrb[0].mxu0 %v344
    %v446 = vpop.f32.mrb[0].mxu0
    %v447 = vadd.f32 0.0, %v446
    %v448 = vpop.f32.mrb[0].mxu0
    %449 = vmatprep.mubr.f32.mxu0 0.0
    %450 = vmatmul.mubr.f32.gmra.mrb[0].mxu0 %v345
    %v451 = vpop.f32.mrb[0].mxu0
    %v452 = vadd.f32 0.0, %v451
    %v453 = vpop.f32.mrb[0].mxu0
    %454 = vmatprep.mubr.f32.mxu0 0.0
    %455 = vmatmul.mubr.f32.gmra.mrb[0].mxu0 %v346
    %v456 = vpop.f32.mrb[0].mxu0
    %v457 = vadd.f32 0.0, %v456
    %v458 = vpop.f32.mrb[0].mxu0
    %459 = vmatprep.mubr.f32.mxu0 0.0
    %460 = vmatmul.mubr.f32.gmra.mrb[0].mxu0 %v347
    %v461 = vpop.f32.mrb[0].mxu0
    %v462 = vadd.f32 0.0, %v461
    %v463 = vpop.f32.mrb[0].mxu0
    %464 = vmatprep.mubr.f32.mxu0 0.0
    %465 = vmatmul.mubr.f32.gmra.mrb[0].mxu0 %v348
    %v466 = vpop.f32.mrb[0].mxu0
    %v467 = vadd.f32 0.0, %v466
    %v468 = vpop.f32.mrb[0].mxu0
    %469 = vmatprep.mubr.f32.mxu0 0.0
    %470 = vmatmul.mubr.f32.gmra.mrb[0].mxu0 %v349
    %v471 = vpop.f32.mrb[0].mxu0
    %v472 = vadd.f32 0.0, %v471
    %v473 = vpop.f32.mrb[0].mxu0
    %474 = vmatprep.mubr.f32.mxu0 0.0
    %475 = vmatmul.mubr.f32.gmra.mrb[0].mxu0 %v350
    %v476 = vpop.f32.mrb[0].mxu0
    %v477 = vadd.f32 0.0, %v476
    %v478 = vpop.f32.mrb[0].mxu0
    %479 = vmatprep.mubr.f32.mxu0 0.0
    %480 = vmatmul.mubr.f32.gmra.mrb[0].mxu0 %v351
    %v481 = vpop.f32.mrb[0].mxu0
    %v482 = vadd.f32 0.0, %v481
    %v483 = vpop.f32.mrb[0].mxu0
    %484 = vmatprep.mubr.f32.mxu0 0.0
    %485 = vmatmul.mubr.f32.gmra.mrb[0].mxu0 %v352
    %v486 = vpop.f32.mrb[0].mxu0
    %v487 = vadd.f32 0.0, %v486
    %v488 = vpop.f32.mrb[0].mxu0
    %489 = vmatprep.mubr.f32.mxu0 0.0
    %490 = vmatmul.mubr.f32.gmra.mrb[0].mxu0 %v353
    %v491 = vpop.f32.mrb[0].mxu0
    %v492 = vadd.f32 0.0, %v491
    %v493 = vpop.f32.mrb[0].mxu0
    %494 = vmatprep.mubr.f32.mxu0 0.0
    %495 = vmatmul.mubr.f32.gmra.mrb[0].mxu0 %v354
    %v496 = vpop.f32.mrb[0].mxu0
    %v497 = vadd.f32 0.0, %v496
    %v498 = vpop.f32.mrb[0].mxu0
    %499 = vdwg.mxu0
    %v500 = vmax.f32 %v422, 0.0
    %v501 = vmax.f32 %v427, 0.0
    %v502 = vmax.f32 %v432, 0.0
    %v503 = vmax.f32 %v437, 0.0
    %v504 = vmax.f32 %v442, 0.0
    %v505 = vmax.f32 %v447, 0.0
    %v506 = vmax.f32 %v452, 0.0
    %v507 = vmax.f32 %v457, 0.0
    %v508 = vmax.f32 %v462, 0.0
    %v509 = vmax.f32 %v467, 0.0
    %v510 = vmax.f32 %v472, 0.0
    %v511 = vmax.f32 %v477, 0.0
    %v512 = vmax.f32 %v482, 0.0
    %v513 = vmax.f32 %v487, 0.0
    %v514 = vmax.f32 %v492, 0.0
    %v515 = vmax.f32 %v497, 0.0
    %v516 = vld [vmem:[#allocation2 + $0x100] sm:$0xff]
    %v517 = vld [vmem:[#allocation2 + $0x108] sm:$0xff]
    %v518 = vld [vmem:[#allocation2 + $0x110] sm:$0xff]
    %v519 = vld [vmem:[#allocation2 + $0x118] sm:$0xff]
    %v520 = vld [vmem:[#allocation2 + $0x120] sm:$0xff]
    %v521 = vld [vmem:[#allocation2 + $0x128] sm:$0xff]
    %v522 = vld [vmem:[#allocation2 + $0x130] sm:$0xff]
    %v523 = vld [vmem:[#allocation2 + $0x138] sm:$0xff]
    %v524 = vld [vmem:[#allocation2 + $0x140] sm:$0xff]
    %v525 = vld [vmem:[#allocation2 + $0x148] sm:$0xff]
    %v526 = vld [vmem:[#allocation2 + $0x150] sm:$0xff]
    %v527 = vld [vmem:[#allocation2 + $0x158] sm:$0xff]
    %v528 = vld [vmem:[#allocation2 + $0x160] sm:$0xff]
    %v529 = vld [vmem:[#allocation2 + $0x168] sm:$0xff]
    %v530 = vld [vmem:[#allocation2 + $0x170] sm:$0xff]
    %v531 = vld [vmem:[#allocation2 + $0x178] sm:$0xff]
    %532 = vmatprep.subr.mxu0 0.0
    %533 = vmatpush1.msra.mxu0 %v500
    %534 = vmatprep.subr.mxu0 0.0
    %535 = vmatpush1.msra.mxu0 %v501
    %536 = vmatprep.subr.mxu0 0.0
    %537 = vmatpush1.msra.mxu0 %v502
    %538 = vmatprep.subr.mxu0 0.0
    %539 = vmatpush1.msra.mxu0 %v503
    %540 = vmatprep.subr.mxu0 0.0
    %541 = vmatpush1.msra.mxu0 %v504
    %542 = vmatprep.subr.mxu0 0.0
    %543 = vmatpush1.msra.mxu0 %v505
    %544 = vmatprep.subr.mxu0 0.0
    %545 = vmatpush1.msra.mxu0 %v506
    %546 = vmatprep.subr.mxu0 0.0
    %547 = vmatpush1.msra.mxu0 %v507
    %548 = vmatprep.subr.mxu0 0.0
    %549 = vmatpush1.msra.mxu0 %v508
    %550 = vmatprep.subr.mxu0 0.0
    %551 = vmatpush1.msra.mxu0 %v509
    %552 = vmatprep.subr.mxu0 0.0
    %553 = vmatpush1.msra.mxu0 %v510
    %554 = vmatprep.subr.mxu0 0.0
    %555 = vmatpush1.msra.mxu0 %v511
    %556 = vmatprep.subr.mxu0 0.0
    %557 = vmatpush1.msra.mxu0 %v512
    %558 = vmatprep.subr.mxu0 0.0
    %559 = vmatpush1.msra.mxu0 %v513
    %560 = vmatprep.subr.mxu0 0.0
    %561 = vmatpush1.msra.mxu0 %v514
    %562 = vmatprep.subr.mxu0 0.0
    %563 = vmatpush1.msra.mxu0 %v515
    %564 = vmatprep.subr.mxu0 0.0
    %565 = vmatpush1.msra.mxu0 0.0
    %566 = vmatprep.subr.mxu0 0.0
    %567 = vmatpush1.msra.mxu0 0.0
    %568 = vmatprep.subr.mxu0 0.0
    %569 = vmatpush1.msra.mxu0 0.0
    %570 = vmatprep.subr.mxu0 0.0
    %571 = vmatpush1.msra.mxu0 0.0
    %572 = vmatprep.subr.mxu0 0.0
    %573 = vmatpush1.msra.mxu0 0.0
    %574 = vmatprep.subr.mxu0 0.0
    %575 = vmatpush1.msra.mxu0 0.0
    %576 = vmatprep.subr.mxu0 0.0
    %577 = vmatpush1.msra.mxu0 0.0
    %578 = vmatprep.subr.mxu0 0.0
    %579 = vmatpush1.msra.mxu0 0.0
    %580 = vmatprep.subr.mxu0 0.0
    %581 = vmatpush1.msra.mxu0 0.0
    %582 = vmatprep.subr.mxu0 0.0
    %583 = vmatpush1.msra.mxu0 0.0
    %584 = vmatprep.subr.mxu0 0.0
    %585 = vmatpush1.msra.mxu0 0.0
    %586 = vmatprep.subr.mxu0 0.0
    %587 = vmatpush1.msra.mxu0 0.0
    %588 = vmatprep.subr.mxu0 0.0
    %589 = vmatpush1.msra.mxu0 0.0
    %590 = vmatprep.subr.mxu0 0.0
    %591 = vmatpush1.msra.mxu0 0.0
    %592 = vmatprep.subr.mxu0 0.0
    %593 = vmatpush1.msra.mxu0 0.0
    %594 = vmatprep.subr.mxu0 0.0
    %595 = vmatpush1.msra.mxu0 0.0
    %596 = vmatprep.mubr.f32.mxu0 0.0
    %597 = vmatmul.mubr.f32.gmra.mrb[0].mxu0 %v516
    %v598 = vpop.f32.mrb[0].mxu0
    %v599 = vadd.f32 0.0, %v598
    %v600 = vpop.f32.mrb[0].mxu0
    %601 = vmatprep.mubr.f32.mxu0 0.0
    %602 = vmatmul.mubr.f32.gmra.mrb[0].mxu0 %v517
    %v603 = vpop.f32.mrb[0].mxu0
    %v604 = vadd.f32 0.0, %v603
    %v605 = vpop.f32.mrb[0].mxu0
    %606 = vmatprep.mubr.f32.mxu0 0.0
    %607 = vmatmul.mubr.f32.gmra.mrb[0].mxu0 %v518
    %v608 = vpop.f32.mrb[0].mxu0
    %v609 = vadd.f32 0.0, %v608
    %v610 = vpop.f32.mrb[0].mxu0
    %611 = vmatprep.mubr.f32.mxu0 0.0
    %612 = vmatmul.mubr.f32.gmra.mrb[0].mxu0 %v519
    %v613 = vpop.f32.mrb[0].mxu0
    %v614 = vadd.f32 0.0, %v613
    %v615 = vpop.f32.mrb[0].mxu0
    %616 = vmatprep.mubr.f32.mxu0 0.0
    %617 = vmatmul.mubr.f32.gmra.mrb[0].mxu0 %v520
    %v618 = vpop.f32.mrb[0].mxu0
    %v619 = vadd.f32 0.0, %v618
    %v620 = vpop.f32.mrb[0].mxu0
    %621 = vmatprep.mubr.f32.mxu0 0.0
    %622 = vmatmul.mubr.f32.gmra.mrb[0].mxu0 %v521
    %v623 = vpop.f32.mrb[0].mxu0
    %v624 = vadd.f32 0.0, %v623
    %v625 = vpop.f32.mrb[0].mxu0
    %626 = vmatprep.mubr.f32.mxu0 0.0
    %627 = vmatmul.mubr.f32.gmra.mrb[0].mxu0 %v522
    %v628 = vpop.f32.mrb[0].mxu0
    %v629 = vadd.f32 0.0, %v628
    %v630 = vpop.f32.mrb[0].mxu0
    %631 = vmatprep.mubr.f32.mxu0 0.0
    %632 = vmatmul.mubr.f32.gmra.mrb[0].mxu0 %v523
    %v633 = vpop.f32.mrb[0].mxu0
    %v634 = vadd.f32 0.0, %v633
    %v635 = vpop.f32.mrb[0].mxu0
    %636 = vmatprep.mubr.f32.mxu0 0.0
    %637 = vmatmul.mubr.f32.gmra.mrb[0].mxu0 %v524
    %v638 = vpop.f32.mrb[0].mxu0
    %v639 = vadd.f32 0.0, %v638
    %v640 = vpop.f32.mrb[0].mxu0
    %641 = vmatprep.mubr.f32.mxu0 0.0
    %642 = vmatmul.mubr.f32.gmra.mrb[0].mxu0 %v525
    %v643 = vpop.f32.mrb[0].mxu0
    %v644 = vadd.f32 0.0, %v643
    %v645 = vpop.f32.mrb[0].mxu0
    %646 = vmatprep.mubr.f32.mxu0 0.0
    %647 = vmatmul.mubr.f32.gmra.mrb[0].mxu0 %v526
    %v648 = vpop.f32.mrb[0].mxu0
    %v649 = vadd.f32 0.0, %v648
    %v650 = vpop.f32.mrb[0].mxu0
    %651 = vmatprep.mubr.f32.mxu0 0.0
    %652 = vmatmul.mubr.f32.gmra.mrb[0].mxu0 %v527
    %v653 = vpop.f32.mrb[0].mxu0
    %v654 = vadd.f32 0.0, %v653
    %v655 = vpop.f32.mrb[0].mxu0
    %656 = vmatprep.mubr.f32.mxu0 0.0
    %657 = vmatmul.mubr.f32.gmra.mrb[0].mxu0 %v528
    %v658 = vpop.f32.mrb[0].mxu0
    %v659 = vadd.f32 0.0, %v658
    %v660 = vpop.f32.mrb[0].mxu0
    %661 = vmatprep.mubr.f32.mxu0 0.0
    %662 = vmatmul.mubr.f32.gmra.mrb[0].mxu0 %v529
    %v663 = vpop.f32.mrb[0].mxu0
    %v664 = vadd.f32 0.0, %v663
    %v665 = vpop.f32.mrb[0].mxu0
    %666 = vmatprep.mubr.f32.mxu0 0.0
    %667 = vmatmul.mubr.f32.gmra.mrb[0].mxu0 %v530
    %v668 = vpop.f32.mrb[0].mxu0
    %v669 = vadd.f32 0.0, %v668
    %v670 = vpop.f32.mrb[0].mxu0
    %671 = vmatprep.mubr.f32.mxu0 0.0
    %672 = vmatmul.mubr.f32.gmra.mrb[0].mxu0 %v531
    %v673 = vpop.f32.mrb[0].mxu0
    %v674 = vadd.f32 0.0, %v673
    %v675 = vpop.f32.mrb[0].mxu0
    %676 = vdwg.mxu0
    %v677 = vmax.f32 %v599, 0.0
    %v678 = vmax.f32 %v604, 0.0
    %v679 = vmax.f32 %v609, 0.0
    %v680 = vmax.f32 %v614, 0.0
    %v681 = vmax.f32 %v619, 0.0
    %v682 = vmax.f32 %v624, 0.0
    %v683 = vmax.f32 %v629, 0.0
    %v684 = vmax.f32 %v634, 0.0
    %v685 = vmax.f32 %v639, 0.0
    %v686 = vmax.f32 %v644, 0.0
    %v687 = vmax.f32 %v649, 0.0
    %v688 = vmax.f32 %v654, 0.0
    %v689 = vmax.f32 %v659, 0.0
    %v690 = vmax.f32 %v664, 0.0
    %v691 = vmax.f32 %v669, 0.0
    %v692 = vmax.f32 %v674, 0.0
    %v693 = vld [vmem:[#allocation2 + $0x180] sm:$0xff]
    %694 = vmatprep.subr.mxu0 0.0
    %695 = vmatpush1.msra.mxu0 %v677
    %696 = vmatprep.subr.mxu0 0.0
    %697 = vmatpush1.msra.mxu0 %v678
    %698 = vmatprep.subr.mxu0 0.0
    %699 = vmatpush1.msra.mxu0 %v679
    %700 = vmatprep.subr.mxu0 0.0
    %701 = vmatpush1.msra.mxu0 %v680
    %702 = vmatprep.subr.mxu0 0.0
    %703 = vmatpush1.msra.mxu0 %v681
    %704 = vmatprep.subr.mxu0 0.0
    %705 = vmatpush1.msra.mxu0 %v682
    %706 = vmatprep.subr.mxu0 0.0
    %707 = vmatpush1.msra.mxu0 %v683
    %708 = vmatprep.subr.mxu0 0.0
    %709 = vmatpush1.msra.mxu0 %v684
    %710 = vmatprep.subr.mxu0 0.0
    %711 = vmatpush1.msra.mxu0 %v685
    %712 = vmatprep.subr.mxu0 0.0
    %713 = vmatpush1.msra.mxu0 %v686
    %714 = vmatprep.subr.mxu0 0.0
    %715 = vmatpush1.msra.mxu0 %v687
    %716 = vmatprep.subr.mxu0 0.0
    %717 = vmatpush1.msra.mxu0 %v688
    %718 = vmatprep.subr.mxu0 0.0
    %719 = vmatpush1.msra.mxu0 %v689
    %720 = vmatprep.subr.mxu0 0.0
    %721 = vmatpush1.msra.mxu0 %v690
    %722 = vmatprep.subr.mxu0 0.0
    %723 = vmatpush1.msra.mxu0 %v691
    %724 = vmatprep.subr.mxu0 0.0
    %725 = vmatpush1.msra.mxu0 %v692
    %726 = vmatprep.subr.mxu0 0.0
    %727 = vmatpush1.msra.mxu0 0.0
    %728 = vmatprep.subr.mxu0 0.0
    %729 = vmatpush1.msra.mxu0 0.0
    %730 = vmatprep.subr.mxu0 0.0
    %731 = vmatpush1.msra.mxu0 0.0
    %732 = vmatprep.subr.mxu0 0.0
    %733 = vmatpush1.msra.mxu0 0.0
    %734 = vmatprep.subr.mxu0 0.0
    %735 = vmatpush1.msra.mxu0 0.0
    %736 = vmatprep.subr.mxu0 0.0
    %737 = vmatpush1.msra.mxu0 0.0
    %738 = vmatprep.subr.mxu0 0.0
    %739 = vmatpush1.msra.mxu0 0.0
    %740 = vmatprep.subr.mxu0 0.0
    %741 = vmatpush1.msra.mxu0 0.0
    %742 = vmatprep.subr.mxu0 0.0
    %743 = vmatpush1.msra.mxu0 0.0
    %744 = vmatprep.subr.mxu0 0.0
    %745 = vmatpush1.msra.mxu0 0.0
    %746 = vmatprep.subr.mxu0 0.0
    %747 = vmatpush1.msra.mxu0 0.0
    %748 = vmatprep.subr.mxu0 0.0
    %749 = vmatpush1.msra.mxu0 0.0
    %750 = vmatprep.subr.mxu0 0.0
    %751 = vmatpush1.msra.mxu0 0.0
    %752 = vmatprep.subr.mxu0 0.0
    %753 = vmatpush1.msra.mxu0 0.0
    %754 = vmatprep.subr.mxu0 0.0
    %755 = vmatpush1.msra.mxu0 0.0
    %756 = vmatprep.subr.mxu0 0.0
    %757 = vmatpush1.msra.mxu0 0.0
    %758 = vmatprep.mubr.f32.mxu0 0.0
    %759 = vmatmul.mubr.f32.gmra.mrb[0].mxu0 %v693
    %v760 = vpop.f32.mrb[0].mxu0
    %v761 = vadd.f32 0.0, %v760
    %v762 = vpop.f32.mrb[0].mxu0
    %763 = vdwg.mxu0
    %v764 = vtanh.pop %v761
    %765 = vst [vmem:[%s2] sm:$0xff] %v764
    // Predicated region
    $region14: #{actor_forward.1} parent=1 // pred_check
      _
    $region15: #{actor_forward.1} parent=1 // pred_check_branch
      %767 = sbr.rel (0) target = $region17
    $region16: #{actor_forward.1} parent=1 // pred_region
      _
    $region17: #{actor_forward.1} parent=1 // pred_fallthru
      _
    // Predicated region
    $region18: #{actor_forward.1} parent=1 // pred_check
      _
    $region19: #{actor_forward.1} parent=1 // pred_check_branch
      %769 = sbr.rel (0) target = $region21
    $region20: #{actor_forward.1} parent=1 // pred_region
      _
    $region21: #{actor_forward.1} parent=1 // pred_fallthru
      _
    %770 = vsyncpa [#allocation3], 1

</llo_original>
